<compile_context>
chip_gen: v7x
topology: tpu7x:2x2x1
jax: 0.10.0
libtpu: 0.0.40
codegen_flags: <defaults>
</compile_context>

<pallas_src>
import functools
import math

import jax
import jax.numpy as jnp
from jax.experimental import pallas as pl
from jax.experimental.pallas import tpu as pltpu


def _round_up(a, b):
    return (a + b - 1) // b * b


@functools.lru_cache(maxsize=None)
def _tile_targets():
    """Per-generation tile / scoped-VMEM targets (chosen to sit at/above the HBM->MXU
    roofline crossover on each chip while leaving double-buffering headroom)."""
    try:
        kind = jax.devices()[0].device_kind.lower()
    except Exception:
        kind = ""
    if "v6" in kind:                        # v6e / Trillium: highest FLOP/byte ratio
        return dict(tm=1024, tn=1024, tk=1024, vmem=64 << 20)
    if "v7" in kind or "tpu7" in kind:      # v7x: 3.2 TB/s HBM but only 64 MiB VMEM
        return dict(tm=512, tn=1024, tk=512, vmem=48 << 20)
    if "v5 lite" in kind or "v5e" in kind or "v5lite" in kind:   # v5e
        return dict(tm=512, tn=512, tk=512, vmem=32 << 20)
    # Unknown / older generations: conservative tiles, default scoped VMEM.
    return dict(tm=256, tn=512, tk=512, vmem=None)


def _choose_tk(dim_in, tk_target):
    """Pick the K tile. Returns (tk, k_padded). Prefers a 128-aligned tile that divides
    K exactly (no padding, no extra HBM pass); falls back to minimal zero-padding of K
    only when dim_in > tk_target and is not 128-aligned (K must be exact for the
    accumulation to stay uncontaminated)."""
    if dim_in <= tk_target:
        return dim_in, dim_in
    k_pad = _round_up(dim_in, 128)
    tk = 128
    t = 256
    while t <= tk_target:
        if k_pad % t == 0:
            tk = t
        t += 128
    return tk, k_pad


def _approx_gelu_kernel(x_ref, w_ref, b_ref, o_ref, acc_ref):
    # x_ref: (tm, tk) activations; cast to matmul dtype in-kernel (no wrapper cast pass)
    # w_ref: (tk, tn) weight, already (K, N)-major + bf16 from one-time param prep
    # b_ref: (1, tn)  f32 bias
    # o_ref: (tm, tn) output
    # acc_ref: (tm, tn) f32 VMEM accumulator (resident across the K grid axis)
    k = pl.program_id(2)

    @pl.when(k == 0)
    def _():
        acc_ref[...] = jnp.zeros_like(acc_ref)

    acc_ref[...] += jnp.dot(
        x_ref[...].astype(w_ref.dtype), w_ref[...],
        preferred_element_type=jnp.float32,
    )

    @pl.when(k == pl.num_programs(2) - 1)
    def _():
        # Epilogue stays entirely in f32 (v5e VPU/EUP have no bf16 path).
        y = acc_ref[...] + b_ref[...].astype(jnp.float32)
        # sigmoid(1.702*y) == 0.5*(1 + tanh(0.851*y)): one EUP op, no exp overflow.
        gate = 0.5 * (jnp.tanh(0.851 * y) + 1.0)
        o_ref[...] = (y * gate).astype(o_ref.dtype)


def prepare_linear_params(weight, bias=None, *, mm_dtype=jnp.bfloat16):
    """One-time parameter prep (OUTSIDE the per-call hot path).

    weight: (dim_out, dim_in) PyTorch nn.Linear layout.
    Returns (w_kn, b2d): weight transposed to (dim_in, dim_out) and cast to the matmul
    dtype once (bf16 -> peak MXU rate, plain K-major vmatmul, no per-call weight copy),
    bias reshaped to (1, dim_out) f32.
    """
    w_kn = jnp.asarray(weight).T.astype(mm_dtype)
    dim_out = w_kn.shape[1]
    if bias is None:
        b2d = jnp.zeros((1, dim_out), jnp.float32)
    else:
        b2d = jnp.asarray(bias).reshape(1, dim_out).astype(jnp.float32)
    return w_kn, b2d


@jax.jit
def approximate_gelu(x, w_kn, b2d):
    """Fused Linear + approximate GELU:  y = x @ w_kn + b ; out = y * sigmoid(1.702*y).

    x:    (..., dim_in)
    w_kn: (dim_in, dim_out)  -- from prepare_linear_params
    b2d:  (1, dim_out) f32
    """
    orig_shape = x.shape
    dim_in, dim_out = w_kn.shape
    m = math.prod(orig_shape[:-1])
    x2d = x.reshape(m, dim_in)

    cfg = _tile_targets()
    tm = m if m <= cfg["tm"] else cfg["tm"]
    tn = dim_out if dim_out <= cfg["tn"] else cfg["tn"]
    tk, k_pad = _choose_tk(dim_in, cfg["tk"])

    w = w_kn
    if k_pad != dim_in:
        # Rare unaligned-K fallback: zero-pad K so the tail cannot contaminate the
        # accumulation. M/N edges use Pallas ragged edge blocks (no padding, no
        # output slice copy).
        x2d = jnp.pad(x2d, ((0, 0), (0, k_pad - dim_in)))
        w = jnp.pad(w, ((0, k_pad - dim_in), (0, 0)))

    grid = (pl.cdiv(m, tm), pl.cdiv(dim_out, tn), k_pad // tk)
    out_dtype = x.dtype

    cost = pl.CostEstimate(
        flops=2 * m * k_pad * dim_out,
        transcendentals=m * dim_out,
        bytes_accessed=(x2d.size * x2d.dtype.itemsize
                        + w.size * w.dtype.itemsize
                        + b2d.size * b2d.dtype.itemsize
                        + m * dim_out * jnp.dtype(out_dtype).itemsize),
    )

    cp_kwargs = dict(dimension_semantics=("parallel", "parallel", "arbitrary"))
    if cfg["vmem"] is not None:
        cp_kwargs["vmem_limit_bytes"] = cfg["vmem"]

    out = pl.pallas_call(
        _approx_gelu_kernel,
        out_shape=jax.ShapeDtypeStruct((m, dim_out), out_dtype),
        grid_spec=pltpu.PrefetchScalarGridSpec(
            num_scalar_prefetch=0,
            grid=grid,
            in_specs=[
                pl.BlockSpec((tm, tk), lambda i, j, k: (i, k)),   # activations
                pl.BlockSpec((tk, tn), lambda i, j, k: (k, j)),   # (K, N) weight
                pl.BlockSpec((1, tn), lambda i, j, k: (0, j)),    # bias
            ],
            out_specs=pl.BlockSpec((tm, tn), lambda i, j, k: (i, j)),
            scratch_shapes=[pltpu.VMEM((tm, tn), jnp.float32)],
        ),
        compiler_params=pltpu.CompilerParams(**cp_kwargs),
        cost_estimate=cost,
    )(x2d, w, b2d)

    return out.reshape(*orig_shape[:-1], dim_out)


if __name__ == "__main__":
    batch, seq, dim_in, dim_out = 2, 8, 32, 64

    key = jax.random.PRNGKey(0)
    kx, kw, kb = jax.random.split(key, 3)

    x = jax.random.normal(kx, (batch, seq, dim_in), dtype=jnp.float32)
    # nn.Linear-style deterministic init: U(-1/sqrt(dim_in), 1/sqrt(dim_in))
    bound = 1.0 / (dim_in ** 0.5)
    weight = jax.random.uniform(kw, (dim_out, dim_in), minval=-bound, maxval=bound,
                                dtype=jnp.float32)
    bias = jax.random.uniform(kb, (dim_out,), minval=-bound, maxval=bound,
                              dtype=jnp.float32)

    # One-time param prep (transpose to (K,N) + bf16 cast), then the fused kernel.
    w_kn, b2d = prepare_linear_params(weight, bias)
    out = approximate_gelu(x, w_kn, b2d)
    out = jax.block_until_ready(out)

    # f32 reference (kernel uses bf16 matmul inputs with f32 accumulation,
    # so compare with bf16-level tolerance).
    y_ref = x.reshape(-1, dim_in) @ weight.T + bias
    ref = (y_ref * jax.nn.sigmoid(1.702 * y_ref)).reshape(batch, seq, dim_out)

    assert out.shape == (batch, seq, dim_out)
    assert jnp.allclose(out, ref, atol=2e-2, rtol=2e-2), float(jnp.max(jnp.abs(out - ref)))

    print("KERNEL_OK")
</pallas_src>

<mosaic_0001>
module attributes {stable_mosaic.version = 11 : i64} {
  func.func @_approx_gelu_kernel(%arg0: i32, %arg1: i32, %arg2: i32, %arg3: memref<16x32xf32, #tpu.memory_space<vmem>>, %arg4: memref<32x64xbf16, #tpu.memory_space<vmem>>, %arg5: memref<1x64xf32, #tpu.memory_space<vmem>>, %arg6: memref<16x64xf32, #tpu.memory_space<vmem>>, %arg7: memref<16x64xf32, #tpu.memory_space<vmem>>) attributes {dimension_semantics = [#tpu.dimension_semantics<parallel>, #tpu.dimension_semantics<parallel>, #tpu.dimension_semantics<arbitrary>], iteration_bounds = array<i64: 1, 1, 1>, scalar_prefetch = 0 : i64, scratch_operands = 1 : i64, tpu.core_type = #tpu.core_type<tc>, window_params = [{transform_indices = @transform_0, window_bounds = array<i64: 16, 32>}, {transform_indices = @transform_1, window_bounds = array<i64: 32, 64>}, {transform_indices = @transform_2, window_bounds = array<i64: 1, 64>}, {transform_indices = @transform_3, window_bounds = array<i64: 16, 64>}]} {
    %c0_i32 = arith.constant 0 : i32
    %0 = arith.cmpi eq, %arg2, %c0_i32 : i32
    %1 = arith.extui %0 : i1 to i32
    %c0_i32_0 = arith.constant 0 : i32
    %2 = arith.cmpi ne, %1, %c0_i32_0 : i32
    scf.if %2 {
      %cst_10 = arith.constant 0.000000e+00 : f32
      %13 = vector.broadcast %cst_10 : f32 to vector<16x64xf32>
      %c0_11 = arith.constant 0 : index
      %c0_12 = arith.constant 0 : index
      %14 = vector.load %arg7[%c0_11, %c0_12] : memref<16x64xf32, #tpu.memory_space<vmem>>, vector<16x64xf32>
      tpu.vector_store %arg7[%c0_11, %c0_12], %13 {strides = array<i32>} : memref<16x64xf32, #tpu.memory_space<vmem>>, vector<16x64xf32>,
    } else {
    }
    %c0 = arith.constant 0 : index
    %c0_1 = arith.constant 0 : index
    %3 = vector.load %arg7[%c0, %c0_1] : memref<16x64xf32, #tpu.memory_space<vmem>>, vector<16x64xf32>
    %c0_2 = arith.constant 0 : index
    %c0_3 = arith.constant 0 : index
    %4 = vector.load %arg3[%c0_2, %c0_3] : memref<16x32xf32, #tpu.memory_space<vmem>>, vector<16x32xf32>
    %5 = arith.truncf %4 : vector<16x32xf32> to vector<16x32xbf16>
    %c0_4 = arith.constant 0 : index
    %c0_5 = arith.constant 0 : index
    %6 = vector.load %arg4[%c0_4, %c0_5] : memref<32x64xbf16, #tpu.memory_space<vmem>>, vector<32x64xbf16>
    %cst = arith.constant dense<0.000000e+00> : vector<16x64xf32>
    %7 = tpu.matmul %5, %6, %cst {dimension_numbers = #tpu.dot_dimension_numbers<[1], [0], [0], [1], [0, 0, 1, 1], [], []>} : vector<16x32xbf16>, vector<32x64xbf16>, vector<16x64xf32> -> vector<16x64xf32>
    %8 = arith.addf %3, %7 : vector<16x64xf32>
    %c0_6 = arith.constant 0 : index
    %c0_7 = arith.constant 0 : index
    %9 = vector.load %arg7[%c0_6, %c0_7] : memref<16x64xf32, #tpu.memory_space<vmem>>, vector<16x64xf32>
    tpu.vector_store %arg7[%c0_6, %c0_7], %8 {strides = array<i32>} : memref<16x64xf32, #tpu.memory_space<vmem>>, vector<16x64xf32>,
    %c0_i32_8 = arith.constant 0 : i32
    %10 = arith.cmpi eq, %arg2, %c0_i32_8 : i32
    %11 = arith.extui %10 : i1 to i32
    %c0_i32_9 = arith.constant 0 : i32
    %12 = arith.cmpi ne, %11, %c0_i32_9 : i32
    scf.if %12 {
      %c0_10 = arith.constant 0 : index
      %c0_11 = arith.constant 0 : index
      %13 = vector.load %arg7[%c0_10, %c0_11] : memref<16x64xf32, #tpu.memory_space<vmem>>, vector<16x64xf32>
      %c0_12 = arith.constant 0 : index
      %c0_13 = arith.constant 0 : index
      %14 = vector.load %arg5[%c0_12, %c0_13] : memref<1x64xf32, #tpu.memory_space<vmem>>, vector<1x64xf32>
      %15 = vector.broadcast %14 : vector<1x64xf32> to vector<16x64xf32>
      %16 = arith.addf %13, %15 : vector<16x64xf32>
      %cst_14 = arith.constant 8.510000e-01 : f32
      %17 = vector.broadcast %cst_14 : f32 to vector<16x64xf32>
      %18 = arith.mulf %17, %16 : vector<16x64xf32>
      %19 = math.tanh %18 : vector<16x64xf32>
      %cst_15 = arith.constant 1.000000e+00 : f32
      %20 = vector.broadcast %cst_15 : f32 to vector<16x64xf32>
      %21 = arith.addf %19, %20 : vector<16x64xf32>
      %cst_16 = arith.constant 5.000000e-01 : f32
      %22 = vector.broadcast %cst_16 : f32 to vector<16x64xf32>
      %23 = arith.mulf %22, %21 : vector<16x64xf32>
      %24 = arith.mulf %16, %23 : vector<16x64xf32>
      %c0_17 = arith.constant 0 : index
      %c0_18 = arith.constant 0 : index
      %25 = vector.load %arg6[%c0_17, %c0_18] : memref<16x64xf32, #tpu.memory_space<vmem>>, vector<16x64xf32>
      tpu.vector_store %arg6[%c0_17, %c0_18], %24 {strides = array<i32>} : memref<16x64xf32, #tpu.memory_space<vmem>>, vector<16x64xf32>,
    } else {
    }
    return
  }
  func.func @transform_0(%arg0: i32, %arg1: i32, %arg2: i32) -> (i32, i32) {
    %c0_i32 = arith.constant 0 : i32
    return %arg0, %arg2 : i32, i32
  }
  func.func @transform_1(%arg0: i32, %arg1: i32, %arg2: i32) -> (i32, i32) {
    %c0_i32 = arith.constant 0 : i32
    return %arg2, %arg1 : i32, i32
  }
  func.func @transform_2(%arg0: i32, %arg1: i32, %arg2: i32) -> (i32, i32) {
    %c0_i32 = arith.constant 0 : i32
    %c0_i32_0 = arith.constant 0 : i32
    return %c0_i32, %arg1 : i32, i32
  }
  func.func @transform_3(%arg0: i32, %arg1: i32, %arg2: i32) -> (i32, i32) {
    %c0_i32 = arith.constant 0 : i32
    return %arg0, %arg1 : i32, i32
  }
}

</mosaic_0001>

<llo_original>
// kernel: approximate_gelu.1
$region0: #{approximate_gelu.1}
  #allocation0 [shape = 'u32[]', space=smem, size = 0x4, offset = 0x4, fixed_abs, tag = 'smem constant byte address 0x4 - core index']
  #allocation1 [shape = 'u32[144,128]{1,0:T(1,128)}', space=vmem, size = 0x12000, scoped, tag = 'internal scratch']
  #allocation2 [shape = 'f32[16,64]{1,0:T(8,128)}', space=vmem, size = 0x2000, scoped, tag = 'scratch operand']
  %s0 = inlined_call_operand.hbm [shape: f32[16,32], index: 0, kind: input, shape index: {}]
  %s1 = inlined_call_operand.hbm [shape: bf16[32,64], index: 1, kind: input, shape index: {}]
  %s2 = inlined_call_operand.vmem [shape: f32[1,64], index: 2, kind: input, shape index: {}]
  %s3 = inlined_call_operand.hbm [shape: f32[16,64], index: 3, kind: output, shape index: {}]
  %s4 = sld [smem:[#allocation0]]
  $region38: #{approximate_gelu.1} parent=0
    _
  %s6 = ssub.s32 1, %s4
  %s7 = scalar_select 0, %s6, %s4
  $region1: #{approximate_gelu.1} parent=0
    #allocation3 [shape = 'u8[8192]{0}', space=vmem, size = 0x2000, scoped, tag = 'input window, operand 0, single buffered']
    #allocation4 [shape = 's32[1]{0}', space=sflag, size = 0x4, scoped, tag = 'scoped memory for approximate_gelu.1']
    #allocation5 [shape = 's32[1]{0}', space=sflag, size = 0x4, scoped, tag = 'scoped memory for approximate_gelu.1']
    #allocation6 [shape = 'u8[8192]{0}', space=vmem, size = 0x2000, scoped, tag = 'input window, operand 1, single buffered']
    #allocation7 [shape = 's32[1]{0}', space=sflag, size = 0x4, scoped, tag = 'scoped memory for approximate_gelu.1']
    #allocation8 [shape = 'u8[8192]{0}', space=vmem, size = 0x2000, scoped, tag = 'output window, operand 0, single buffered']
    %8 = vsyncpa [#allocation4], 0
    %9 = vsyncpa [#allocation7], 0
    %10 = vsyncpa [#allocation5], 0
    // Predicated region
    $region2: #{approximate_gelu.1} parent=1 // pred_check
      _
    $region3: #{approximate_gelu.1} parent=1 // pred_check_branch
      %12 = sbr.rel (0) target = $region5
    $region4: #{approximate_gelu.1} parent=1 // pred_region
      %s14 = ssub.s32 256, 256
      %15 = vsyncadd [#allocation4], %s14
      %s16 = sshll.u32 [#allocation3], 4
      %s17 = int_to_ptr.vmem [resolvable:$true] %s16
      %22 = dma.hbm_to_vmem [thread:$0]  %s0, 256, %s17, [#allocation4], 128, 128, 8
    $region5: #{approximate_gelu.1} parent=1 // pred_fallthru
      _
    // Predicated region
    $region6: #{approximate_gelu.1} parent=1 // pred_check
      _
    $region7: #{approximate_gelu.1} parent=1 // pred_check_branch
      %24 = sbr.rel (0) target = $region9
    $region8: #{approximate_gelu.1} parent=1 // pred_region
      %s26 = ssub.s32 256, 256
      %27 = vsyncadd [#allocation7], %s26
      %s28 = sshll.u32 [#allocation6], 4
      %s29 = int_to_ptr.vmem [resolvable:$true] %s28
      %34 = dma.hbm_to_vmem [thread:$0]  %s1, 256, %s29, [#allocation7], 64, 64, 4
    $region9: #{approximate_gelu.1} parent=1 // pred_fallthru
      _
    // Predicated region
    $region10: #{approximate_gelu.1} parent=1 // pred_check
      _
    $region11: #{approximate_gelu.1} parent=1 // pred_check_branch
      %36 = sbr.rel (0) target = $region13
    $region12: #{approximate_gelu.1} parent=1 // pred_region
      _
    $region13: #{approximate_gelu.1} parent=1 // pred_fallthru
      _
    // Predicated region
    $region14: #{approximate_gelu.1} parent=1 // pred_check
      _
    $region15: #{approximate_gelu.1} parent=1 // pred_check_branch
      %38 = sbr.rel (0) target = $region17
    $region16: #{approximate_gelu.1} parent=1 // pred_region
      %39 = dma.done [#allocation4], 256
    $region17: #{approximate_gelu.1} parent=1 // pred_fallthru
      _
    // Predicated region
    $region18: #{approximate_gelu.1} parent=1 // pred_check
      _
    $region19: #{approximate_gelu.1} parent=1 // pred_check_branch
      %41 = sbr.rel (0) target = $region21
    $region20: #{approximate_gelu.1} parent=1 // pred_region
      %42 = dma.done [#allocation7], 256
    $region21: #{approximate_gelu.1} parent=1 // pred_fallthru
      _
    %p44 = scmp.eq.s32.totalorder 0, 0
    // Predicated region
    $region22: #{approximate_gelu.1} parent=1 // pred_check
      %p45 = pneg %p44
    $region23: #{approximate_gelu.1} parent=1 // pred_check_branch
      %47 = sbr.rel (%p45) target = $region25
    $region24: #{approximate_gelu.1} parent=1 // pred_region
      %vm48 = vcmask 523264
      %49 = vst.msk [vmem:[#allocation2] sm:$0xff] %vm48, 0.0
      %50 = vst.msk [vmem:[#allocation2 + $0x8] sm:$0xff] %vm48, 0.0
    $region25: #{approximate_gelu.1} parent=1 // pred_fallthru
      _
    %v51 = vld [vmem:[#allocation2] sm:$0xff]
    %v52 = vld [vmem:[#allocation2 + $0x8] sm:$0xff]
    %v53 = vld [vmem:[#allocation3] sm:$0xff]
    %v54 = vld [vmem:[#allocation3 + $0x8] sm:$0xff]
    %v55 = vpack.c.bf16 %v54, %v53
    %v56 = vld [vmem:[#allocation6] sm:$0xf]
    %v57 = vld [vmem:[#allocation6 + $0x4] sm:$0xf]
    %v58 = vld [vmem:[#allocation6 + $0x8] sm:$0xf]
    %v59 = vld [vmem:[#allocation6 + $0xc] sm:$0xf]
    %v64 = vunpack.c.l.b16 %v56
    %v65 = vunpack.c.l.b16 %v57
    %v66 = vunpack.c.l.b16 %v58
    %v67 = vunpack.c.l.b16 %v59
    %v68 = vpack.c.b16 %v65, %v64
    %v69 = vpack.c.b16 %v67, %v66
    %vm72 = vcmask 261120
    %v74 = vsel %vm72, %v55, 0
    %76 = vmatprep.subr.bf16.mxu0 0
    %77 = vmatpush1.bf16.msra.mxu0 %v68
    %78 = vmatprep.subr.bf16.mxu0 0
    %79 = vmatpush1.bf16.msra.mxu0 %v69
    %80 = vmatprep.subr.bf16.mxu0 0
    %81 = vmatpush1.bf16.msra.mxu0 0
    %82 = vmatprep.subr.bf16.mxu0 0
    %83 = vmatpush1.bf16.msra.mxu0 0
    %84 = vmatprep.subr.bf16.mxu0 0
    %85 = vmatpush1.bf16.msra.mxu0 0
    %86 = vmatprep.subr.bf16.mxu0 0
    %87 = vmatpush1.bf16.msra.mxu0 0
    %88 = vmatprep.subr.bf16.mxu0 0
    %89 = vmatpush1.bf16.msra.mxu0 0
    %90 = vmatprep.subr.bf16.mxu0 0
    %91 = vmatpush1.bf16.msra.mxu0 0
    %92 = vmatprep.subr.bf16.mxu0 0
    %93 = vmatpush1.bf16.msra.mxu0 0
    %94 = vmatprep.subr.bf16.mxu0 0
    %95 = vmatpush1.bf16.msra.mxu0 0
    %96 = vmatprep.subr.bf16.mxu0 0
    %97 = vmatpush1.bf16.msra.mxu0 0
    %98 = vmatprep.subr.bf16.mxu0 0
    %99 = vmatpush1.bf16.msra.mxu0 0
    %100 = vmatprep.subr.bf16.mxu0 0
    %101 = vmatpush1.bf16.msra.mxu0 0
    %102 = vmatprep.subr.bf16.mxu0 0
    %103 = vmatpush1.bf16.msra.mxu0 0
    %104 = vmatprep.subr.bf16.mxu0 0
    %105 = vmatpush1.bf16.msra.mxu0 0
    %106 = vmatprep.subr.bf16.mxu0 0
    %107 = vmatpush1.bf16.msra.mxu0 0
    %108 = vmatprep.mubr.bf16.mxu0 0
    %109 = vmatmul.mubr.bf16.gmra.mrb[0].mxu0 %v74
    %v110 = vpop.f32.mrb[0].mxu0
    %v111 = vadd.f32 0.0, %v110
    %v112 = vpop.f32.mrb[0].mxu0
    %v113 = vpop.f32.mrb[0].mxu0
    %v114 = vadd.f32 0.0, %v113
    %v115 = vpop.f32.mrb[0].mxu0
    %116 = vdwg.mxu0
    %v117 = vadd.f32 %v51, %v111
    %v118 = vadd.f32 %v52, %v114
    %vm119 = vcmask 523264
    %120 = vst.msk [vmem:[#allocation2] sm:$0xff] %vm119, %v117
    %121 = vst.msk [vmem:[#allocation2 + $0x8] sm:$0xff] %vm119, %v118
    // Predicated region
    $region26: #{approximate_gelu.1} parent=1 // pred_check
      %p122 = pneg %p44
    $region27: #{approximate_gelu.1} parent=1 // pred_check_branch
      %124 = sbr.rel (%p122) target = $region29
    $region28: #{approximate_gelu.1} parent=1 // pred_region
      %v125 = vld [vmem:[#allocation2] sm:$0xff]
      %v126 = vld [vmem:[#allocation2 + $0x8] sm:$0xff]
      %v127 = vld [vmem:[%s2] sm:$0x1]
      %v129 = vlaneseq
      %v130 = vshrl.u32 %v129, 7
      %v131 = vsub.s32 0, %v130
      %v132 = vrot.slane %v127, %v131
      %v134 = vadd.f32 %v125, %v132
      %v135 = vadd.f32 %v126, %v132
      %v136 = vmul.f32 %v134, 0.851
      %v137 = vmul.f32 %v135, 0.851
      %v138 = vtanh.pop %v136
      %v139 = vtanh.pop %v137
      %v140 = vadd.f32 %v138, 1.0
      %v141 = vadd.f32 %v139, 1.0
      %v142 = vmul.f32 %v140, 0.5
      %v143 = vmul.f32 %v141, 0.5
      %v144 = vmul.f32 %v134, %v142
      %v145 = vmul.f32 %v135, %v143
      %146 = vst.msk [vmem:[#allocation8] sm:$0xff] %vm119, %v144
      %147 = vst.msk [vmem:[#allocation8 + $0x8] sm:$0xff] %vm119, %v145
    $region29: #{approximate_gelu.1} parent=1 // pred_fallthru
      _
    // Predicated region
    $region30: #{approximate_gelu.1} parent=1 // pred_check
      _
    $region31: #{approximate_gelu.1} parent=1 // pred_check_branch
      %149 = sbr.rel (0) target = $region33
    $region32: #{approximate_gelu.1} parent=1 // pred_region
      %s151 = ssub.s32 256, 256
      %152 = vsyncadd [#allocation5], %s151
      %s153 = sshll.u32 [#allocation8], 4
      %s154 = int_to_ptr.vmem [resolvable:$true] %s153
      %159 = dma.vmem_to_hbm [thread:$0]  %s154, 256, %s3, [#allocation5], 128, 128, 8
    $region33: #{approximate_gelu.1} parent=1 // pred_fallthru
      _
    // Predicated region
    $region34: #{approximate_gelu.1} parent=1 // pred_check
      _
    $region35: #{approximate_gelu.1} parent=1 // pred_check_branch
      %161 = sbr.rel (0) target = $region37
    $region36: #{approximate_gelu.1} parent=1 // pred_region
      %162 = dma.done [#allocation5], 256
    $region37: #{approximate_gelu.1} parent=1 // pred_fallthru
      _
    %163 = vsyncpa [#allocation4], 1
    %164 = vsyncpa [#allocation7], 1
    %165 = vsyncpa [#allocation5], 1

</llo_original>
